<compile_context>
chip_gen: v6e
topology: v6e:2x2x1
jax: 0.10.0
libtpu: 0.0.40
codegen_flags: <defaults>
</compile_context>

<pallas_src>
import functools
import math

import jax
import jax.numpy as jnp
from jax.experimental import pallas as pl
from jax.experimental.pallas import tpu as pltpu


def _round_up(x, n):
    return ((x + n - 1) // n) * n


def _tpu_hw_info():
    """Best-effort (vmem_bytes_per_core, tensorcores_per_chip) with conservative fallbacks."""
    kind = ""
    try:
        kind = jax.devices()[0].device_kind.lower()
    except Exception:
        pass
    is_v7 = ("v7" in kind) or ("7x" in kind)
    vmem = None
    try:
        info_fn = getattr(pltpu, "get_tpu_info", None)
        if info_fn is not None:
            vmem = int(getattr(info_fn(), "vmem_capacity_bytes", 0)) or None
    except Exception:
        vmem = None
    if vmem is None:
        # v7x: 64 MiB / TensorCore; v5e/v6e: 128 MiB.  Unknown -> be conservative.
        vmem = (64 << 20) if is_v7 else ((128 << 20) if kind else (64 << 20))
    n_tc = 2 if is_v7 else 1   # v5e / v6e are single-TensorCore parts
    return vmem, n_tc


def _choose_fold(d_in, d_out, weight_itemsize, vmem_cap):
    """Fold consecutive rows so the kernel's output last dim is a multiple of 128
    (lane-dense, unmasked vector stores).  fold == 1 when d_out is already 128-aligned."""
    fold = 128 // math.gcd(d_out, 128)
    if fold > 1:
        packed_bytes = (fold * d_in) * (2 * fold * d_out) * weight_itemsize
        # Generation-aware guard: the fold^2-replicated weight must leave most of VMEM
        # for the activation tiles (vmem_cap is 64 MiB on v7x, 128 MiB on v5e/v6e).
        if packed_bytes > vmem_cap // 4:
            fold = 1   # pathological tiny/odd d_out with huge d_in: masked-store fallback
    return fold


def pack_vbr_params(w_scale, b_scale, w_shift, b_shift, *, fold=1, weight_dtype=None):
    """Pack the two Linears into one fused (optionally block-diagonal replicated) weight.
    Call ONCE at init time -- this is deliberately NOT on the per-call path."""
    if weight_dtype is not None:
        w_scale = w_scale.astype(weight_dtype)
        w_shift = w_shift.astype(weight_dtype)
    b_scale = b_scale.astype(jnp.float32)
    b_shift = b_shift.astype(jnp.float32)
    if fold == 1:
        w_all = jnp.concatenate([w_scale, w_shift], axis=1)               # [d_in, 2*d_out]
        b_all = jnp.concatenate([b_scale, b_shift]).reshape(1, -1)
    else:
        eye = jnp.eye(fold, dtype=w_scale.dtype)
        w_all = jnp.concatenate(                                          # [fold*d_in, 2*fold*d_out]
            [jnp.kron(eye, w_scale), jnp.kron(eye, w_shift)], axis=1)
        b_all = jnp.concatenate(
            [jnp.tile(b_scale, fold), jnp.tile(b_shift, fold)]).reshape(1, -1)
    return w_all, b_all


def _vbr_kernel(inp_ref, cond_ref, w_ref, b_ref, out_ref, *, half):
    """One row tile.  w_ref/b_ref hold the fused [scale | shift] parameters; they are
    whole-array VMEM residents with a grid-invariant view, so Mosaic keeps a single copy
    (pin with pipeline_mode=pl.Buffered(1) if a future toolchain double-buffers them).
    `half` is the static lane offset where the packed matmul result switches from scale
    to shift (a multiple of 128 on the fold path)."""
    sb = jnp.dot(cond_ref[...], w_ref[...],
                 preferred_element_type=jnp.float32) + b_ref[...]
    scale = sb[:, :half]
    shift = sb[:, half:]
    out_ref[...] = (inp_ref[...].astype(jnp.float32) * scale + shift).astype(out_ref.dtype)


def _pick_row_tile(m_f, per_row_bytes, resident_bytes, vmem_cap, n_tc, tm_req):
    """Row-tile size: as big as fits VMEM; on multi-TC chips, keep >= 2 steps per core."""
    budget = max(int(vmem_cap * 0.75) - resident_bytes - (2 << 20), 1 << 20)
    tm = max(16, _round_up(min(tm_req, m_f), 16))
    # Shrink the tile (never raise the limit past physical VMEM) until it fits.
    while tm > 16 and tm * per_row_bytes > budget:
        tm = max(16, _round_up(tm // 2, 16))
    if n_tc > 1 and m_f > 2 * n_tc * 16:
        # Multi-TensorCore (v7x): aim for an even grid with >= 2 steps per core so each
        # core keeps its double-buffer pipeline busy and the cores stay load-balanced.
        steps = _round_up(max(pl.cdiv(m_f, tm), 2 * n_tc), n_tc)
        tm = max(16, min(tm, _round_up(pl.cdiv(m_f, steps), 16)))
        steps = pl.cdiv(m_f, tm)
        if steps > 1 and steps % n_tc:                       # best-effort evenness fix-up
            tm = max(16, _round_up(pl.cdiv(m_f, _round_up(steps, n_tc)), 16))
    if tm >= m_f:
        return m_f          # single full-extent block (always a legal block shape)
    return tm


def vbr_condition_packed(inp, cond, w_all, b_all, *, fold, tm=1024):
    """inp: [..., d_out], cond: [..., d_in]; w_all/b_all from pack_vbr_params(fold=fold)."""
    lead_shape = inp.shape[:-1]
    d_out = inp.shape[-1]
    d_in = cond.shape[-1]
    half = fold * d_out
    assert w_all.shape == (fold * d_in, 2 * fold * d_out), "w_all does not match fold"

    inp2 = inp.reshape(-1, d_out)
    cond2 = cond.reshape(-1, d_in)
    m = inp2.shape[0]

    # Pad at most fold-1 rows so the (contiguous, hence free) row-fold reshape is legal.
    # No padding to the grid: pl.cdiv + Pallas partial-tile clipping handle the ragged
    # last row tile (OOB rows are garbage whose outputs are never committed).
    pad = (-m) % fold
    if pad:
        inp2 = jnp.pad(inp2, ((0, pad), (0, 0)))
        cond2 = jnp.pad(cond2, ((0, pad), (0, 0)))
    m_f = (m + pad) // fold
    inp_f = inp2.reshape(m_f, fold * d_out)
    cond_f = cond2.reshape(m_f, fold * d_in)

    vmem_cap, n_tc = _tpu_hw_info()

    act_b = inp_f.dtype.itemsize
    cnd_b = cond_f.dtype.itemsize
    # Per folded row: double-buffered input/cond/output tiles + the f32 matmul result
    # temporary (2*half lanes) + the f32 upcast copy of the input tile.
    per_row = (2 * (fold * d_out * act_b + fold * d_out * act_b + fold * d_in * cnd_b)
               + 2 * half * 4 + fold * d_out * 4)
    resident = (w_all.size * w_all.dtype.itemsize + b_all.size * b_all.dtype.itemsize)

    tm_eff = _pick_row_tile(m_f, per_row, resident, vmem_cap, n_tc, tm)
    grid_n = pl.cdiv(m_f, tm_eff)

    need = tm_eff * per_row + resident + (2 << 20)
    vmem_limit = int(min(max(need, 32 << 20), vmem_cap - (8 << 20)))

    out_bytes = m_f * fold * d_out * act_b
    cost = pl.CostEstimate(
        flops=int(2 * m_f * (fold * d_in) * (2 * fold * d_out) + 3 * m_f * fold * d_out),
        transcendentals=0,
        bytes_accessed=int(inp_f.size * act_b + cond_f.size * cnd_b + out_bytes + resident),
    )

    out_f = pl.pallas_call(
        functools.partial(_vbr_kernel, half=half),
        out_shape=jax.ShapeDtypeStruct((m_f, fold * d_out), inp.dtype),
        grid_spec=pltpu.PrefetchScalarGridSpec(
            num_scalar_prefetch=0,
            grid=(grid_n,),
            in_specs=[
                pl.BlockSpec((tm_eff, fold * d_out), lambda i: (i, 0)),   # input rows
                pl.BlockSpec((tm_eff, fold * d_in), lambda i: (i, 0)),    # cond rows
                # fused weight + bias: whole-array VMEM residents (single copy)
                pl.BlockSpec(memory_space=pltpu.MemorySpace.VMEM),
                pl.BlockSpec(memory_space=pltpu.MemorySpace.VMEM),
            ],
            out_specs=pl.BlockSpec((tm_eff, fold * d_out), lambda i: (i, 0)),
        ),
        compiler_params=pltpu.CompilerParams(
            dimension_semantics=("parallel",),
            vmem_limit_bytes=vmem_limit,
        ),
        cost_estimate=cost,
    )(inp_f, cond_f, w_all, b_all)

    out2 = out_f.reshape(m_f * fold, d_out)
    if pad:
        out2 = out2[:m]          # only when the row count wasn't fold-aligned (<= fold-1 rows)
    return out2.reshape(*lead_shape, d_out)


def make_vbr_condition(w_scale, b_scale, w_shift, b_shift, *, act_dtype=jnp.float32, tm=1024):
    """Build a jitted VBRCondition apply(input, cond).  All weight packing (concat / kron /
    dtype cast) and the fold decision happen ONCE here (init time), never per call.
    w_*: [d_in, d_out] (transposed vs. torch nn.Linear.weight), b_*: [d_out]."""
    d_in, d_out = w_scale.shape
    vmem_cap, _ = _tpu_hw_info()
    if jnp.dtype(act_dtype) == jnp.dtype(jnp.bfloat16):
        weight_dtype = jnp.bfloat16       # single-pass MXU, half the resident VMEM / DMA
    else:
        weight_dtype = w_scale.dtype
    fold = _choose_fold(d_in, d_out, jnp.dtype(weight_dtype).itemsize, vmem_cap)
    w_all, b_all = pack_vbr_params(w_scale, b_scale, w_shift, b_shift,
                                   fold=fold, weight_dtype=weight_dtype)
    fn = jax.jit(functools.partial(vbr_condition_packed, fold=fold, tm=tm))

    def apply(inp, cond):
        return fn(inp, cond, w_all, b_all)

    return apply


def _init_linear(key, d_in, d_out, dtype=jnp.float32):
    # Deterministic nn.Linear-style init: U(-1/sqrt(fan_in), 1/sqrt(fan_in)).
    kw, kb = jax.random.split(key)
    bound = 1.0 / (d_in ** 0.5)
    w = jax.random.uniform(kw, (d_in, d_out), dtype, minval=-bound, maxval=bound)
    b = jax.random.uniform(kb, (d_out,), dtype, minval=-bound, maxval=bound)
    return w, b


def _reference(inp, cond, w_s, b_s, w_h, b_h):
    return inp * (cond @ w_s + b_s) + (cond @ w_h + b_h)


if __name__ == "__main__":
    key = jax.random.PRNGKey(0)

    # Case 1: f32, D_out=64 (row-fold -> 128-lane output), odd row count (21) exercising
    # the <=fold-1-row pad and the cdiv/partial-tile path.  Shapes match HyperDecoder's VBR
    # stage: cond dim = vbr, output dim = dim_mid.
    k_in, k_cond, k_s, k_h, key = jax.random.split(key, 5)
    B, S, D_IN, D_OUT = 3, 7, 32, 64
    inp = jax.random.normal(k_in, (B, S, D_OUT), jnp.float32)
    cond = jax.random.normal(k_cond, (B, S, D_IN), jnp.float32)
    w_s, b_s = _init_linear(k_s, D_IN, D_OUT)
    w_h, b_h = _init_linear(k_h, D_IN, D_OUT)
    vbr = make_vbr_condition(w_s, b_s, w_h, b_h)
    out = jax.block_until_ready(vbr(inp, cond))
    ref = _reference(inp, cond, w_s, b_s, w_h, b_h)
    assert out.shape == ref.shape
    assert jnp.allclose(out, ref, atol=1e-4, rtol=1e-4), "f32 fold-path mismatch"

    # Case 2: f32, D_out=128 (already lane-dense, fold=1 path, no pad at all).
    k_in, k_cond, k_s, k_h, key = jax.random.split(key, 5)
    B, S, D_IN, D_OUT = 2, 8, 16, 128
    inp = jax.random.normal(k_in, (B, S, D_OUT), jnp.float32)
    cond = jax.random.normal(k_cond, (B, S, D_IN), jnp.float32)
    w_s, b_s = _init_linear(k_s, D_IN, D_OUT)
    w_h, b_h = _init_linear(k_h, D_IN, D_OUT)
    vbr = make_vbr_condition(w_s, b_s, w_h, b_h)
    out = jax.block_until_ready(vbr(inp, cond))
    ref = _reference(inp, cond, w_s, b_s, w_h, b_h)
    assert jnp.allclose(out, ref, atol=1e-4, rtol=1e-4), "f32 fold=1 mismatch"

    # Case 3: bf16 activations + bf16 packed weights (half HBM/VMEM traffic); accumulation
    # and bias add stay f32 inside the kernel.
    k_in, k_cond, k_s, k_h, key = jax.random.split(key, 5)
    B, S, D_IN, D_OUT = 2, 8, 32, 64
    inp32 = jax.random.normal(k_in, (B, S, D_OUT), jnp.float32)
    cond32 = jax.random.normal(k_cond, (B, S, D_IN), jnp.float32)
    w_s, b_s = _init_linear(k_s, D_IN, D_OUT)
    w_h, b_h = _init_linear(k_h, D_IN, D_OUT)
    vbr16 = make_vbr_condition(w_s, b_s, w_h, b_h, act_dtype=jnp.bfloat16)
    out16 = jax.block_until_ready(
        vbr16(inp32.astype(jnp.bfloat16), cond32.astype(jnp.bfloat16)))
    ref16 = _reference(inp32, cond32, w_s, b_s, w_h, b_h)
    assert out16.dtype == jnp.bfloat16
    assert jnp.allclose(out16.astype(jnp.float32), ref16, atol=6e-2, rtol=6e-2), "bf16 mismatch"

    print("KERNEL_OK")
</pallas_src>

<mosaic_0001>
module attributes {stable_mosaic.version = 11 : i64} {
  func.func @_vbr_kernel(%arg0: i32, %arg1: memref<11x128xf32, #tpu.memory_space<vmem>>, %arg2: memref<11x64xf32, #tpu.memory_space<vmem>>, %arg3: memref<64x256xf32, #tpu.memory_space<vmem>>, %arg4: memref<1x256xf32, #tpu.memory_space<vmem>>, %arg5: memref<11x128xf32, #tpu.memory_space<vmem>>) attributes {dimension_semantics = [#tpu.dimension_semantics<parallel>], iteration_bounds = array<i64: 1>, scalar_prefetch = 0 : i64, scratch_operands = 0 : i64, tpu.core_type = #tpu.core_type<tc>, window_params = [{transform_indices = @transform_0, window_bounds = array<i64: 11, 128>}, {transform_indices = @transform_1, window_bounds = array<i64: 11, 64>}, {pipeline_mode = #tpu.pipeline_mode<synchronous>, transform_indices = @transform_2, window_bounds = array<i64: 64, 256>}, {pipeline_mode = #tpu.pipeline_mode<synchronous>, transform_indices = @transform_3, window_bounds = array<i64: 1, 256>}, {transform_indices = @transform_4, window_bounds = array<i64: 11, 128>}]} {
    %c0 = arith.constant 0 : index
    %c0_0 = arith.constant 0 : index
    %0 = vector.load %arg2[%c0, %c0_0] : memref<11x64xf32, #tpu.memory_space<vmem>>, vector<11x64xf32>
    %c0_1 = arith.constant 0 : index
    %c0_2 = arith.constant 0 : index
    %1 = vector.load %arg3[%c0_1, %c0_2] : memref<64x256xf32, #tpu.memory_space<vmem>>, vector<64x256xf32>
    %cst = arith.constant dense<0.000000e+00> : vector<11x256xf32>
    %2 = tpu.matmul %0, %1, %cst {dimension_numbers = #tpu.dot_dimension_numbers<[1], [0], [0], [1], [0, 0, 1, 1], [], []>} : vector<11x64xf32>, vector<64x256xf32>, vector<11x256xf32> -> vector<11x256xf32>
    %c0_3 = arith.constant 0 : index
    %c0_4 = arith.constant 0 : index
    %3 = vector.load %arg4[%c0_3, %c0_4] : memref<1x256xf32, #tpu.memory_space<vmem>>, vector<1x256xf32>
    %4 = vector.broadcast %3 : vector<1x256xf32> to vector<11x256xf32>
    %5 = arith.addf %2, %4 : vector<11x256xf32>
    %6 = vector.extract_strided_slice %5 {offsets = [0, 0], sizes = [11, 128], strides = [1, 1]} : vector<11x256xf32> to vector<11x128xf32>
    %7 = vector.extract_strided_slice %5 {offsets = [0, 128], sizes = [11, 128], strides = [1, 1]} : vector<11x256xf32> to vector<11x128xf32>
    %c0_5 = arith.constant 0 : index
    %c0_6 = arith.constant 0 : index
    %8 = vector.load %arg1[%c0_5, %c0_6] : memref<11x128xf32, #tpu.memory_space<vmem>>, vector<11x128xf32>
    %9 = arith.mulf %8, %6 : vector<11x128xf32>
    %10 = arith.addf %9, %7 : vector<11x128xf32>
    %c0_7 = arith.constant 0 : index
    %c0_8 = arith.constant 0 : index
    %11 = vector.load %arg5[%c0_7, %c0_8] : memref<11x128xf32, #tpu.memory_space<vmem>>, vector<11x128xf32>
    tpu.vector_store %arg5[%c0_7, %c0_8], %10 {strides = array<i32>} : memref<11x128xf32, #tpu.memory_space<vmem>>, vector<11x128xf32>,
    return
  }
  func.func @transform_0(%arg0: i32) -> (i32, i32) {
    %c0_i32 = arith.constant 0 : i32
    %c0_i32_0 = arith.constant 0 : i32
    return %arg0, %c0_i32 : i32, i32
  }
  func.func @transform_1(%arg0: i32) -> (i32, i32) {
    %c0_i32 = arith.constant 0 : i32
    %c0_i32_0 = arith.constant 0 : i32
    return %arg0, %c0_i32 : i32, i32
  }
  func.func @transform_2(%arg0: i32) -> (i32, i32) {
    %c0_i32 = arith.constant 0 : i32
    %c0_i32_0 = arith.constant 0 : i32
    %c0_i32_1 = arith.constant 0 : i32
    return %c0_i32, %c0_i32_0 : i32, i32
  }
  func.func @transform_3(%arg0: i32) -> (i32, i32) {
    %c0_i32 = arith.constant 0 : i32
    %c0_i32_0 = arith.constant 0 : i32
    %c0_i32_1 = arith.constant 0 : i32
    return %c0_i32, %c0_i32_0 : i32, i32
  }
  func.func @transform_4(%arg0: i32) -> (i32, i32) {
    %c0_i32 = arith.constant 0 : i32
    %c0_i32_0 = arith.constant 0 : i32
    return %arg0, %c0_i32 : i32, i32
  }
}

</mosaic_0001>

<llo_original>
// kernel: vbr_condition_packed.1
$region0: #{vbr_condition_packed.1}
  #allocation0 [shape = 'u32[]', space=smem, size = 0x4, offset = 0x4, fixed_abs, tag = 'smem constant byte address 0x4 - core index']
  #allocation1 [shape = 'u32[144,128]{1,0:T(1,128)}', space=vmem, size = 0x12000, scoped, tag = 'internal scratch']
  %s0 = inlined_call_operand.vmem [shape: f32[11,128], index: 0, kind: input, shape index: {}]
  %s1 = inlined_call_operand.vmem [shape: f32[11,64], index: 1, kind: input, shape index: {}]
  %s2 = inlined_call_operand.vmem [shape: f32[64,256], index: 2, kind: input, shape index: {}]
  %s3 = inlined_call_operand.vmem [shape: f32[1,256], index: 3, kind: input, shape index: {}]
  %s4 = inlined_call_operand.vmem [shape: f32[11,128], index: 4, kind: output, shape index: {}]
  %s5 = sld [smem:[#allocation0]]
  $region26: #{vbr_condition_packed.1} parent=0
    _
  %s7 = ssub.s32 1, %s5
  %s8 = scalar_select 0, %s7, %s5
  // Predicated region
  $region2: #{vbr_condition_packed.1} parent=0 // pred_check
    _
  $region3: #{vbr_condition_packed.1} parent=0 // pred_check_branch
    %10 = sbr.rel (0) target = $region5
  $region4: #{vbr_condition_packed.1} parent=0 // pred_region
    _
  $region5: #{vbr_condition_packed.1} parent=0 // pred_fallthru
    _
  // Predicated region
  $region6: #{vbr_condition_packed.1} parent=0 // pred_check
    _
  $region7: #{vbr_condition_packed.1} parent=0 // pred_check_branch
    %12 = sbr.rel (0) target = $region9
  $region8: #{vbr_condition_packed.1} parent=0 // pred_region
    _
  $region9: #{vbr_condition_packed.1} parent=0 // pred_fallthru
    _
  // Predicated region
  $region10: #{vbr_condition_packed.1} parent=0 // pred_check
    _
  $region11: #{vbr_condition_packed.1} parent=0 // pred_check_branch
    %14 = sbr.rel (0) target = $region13
  $region12: #{vbr_condition_packed.1} parent=0 // pred_region
    _
  $region13: #{vbr_condition_packed.1} parent=0 // pred_fallthru
    _
  // Predicated region
  $region14: #{vbr_condition_packed.1} parent=0 // pred_check
    _
  $region15: #{vbr_condition_packed.1} parent=0 // pred_check_branch
    %16 = sbr.rel (0) target = $region17
  $region16: #{vbr_condition_packed.1} parent=0 // pred_region
    _
  $region17: #{vbr_condition_packed.1} parent=0 // pred_fallthru
    _
  %v17 = vld [vmem:[%s1] sm:$0xff]
  %v18 = vld [vmem:[%s1 + $0x8] sm:$0x7]
  %v19 = vld [vmem:[%s2] sm:$0xff]
  %v20 = vld [vmem:[%s2 + $0x8] sm:$0xff]
  %v21 = vld [vmem:[%s2 + $0x10] sm:$0xff]
  %v22 = vld [vmem:[%s2 + $0x18] sm:$0xff]
  %v23 = vld [vmem:[%s2 + $0x20] sm:$0xff]
  %v24 = vld [vmem:[%s2 + $0x28] sm:$0xff]
  %v25 = vld [vmem:[%s2 + $0x30] sm:$0xff]
  %v26 = vld [vmem:[%s2 + $0x38] sm:$0xff]
  %v27 = vld [vmem:[%s2 + $0x40] sm:$0xff]
  %v28 = vld [vmem:[%s2 + $0x48] sm:$0xff]
  %v29 = vld [vmem:[%s2 + $0x50] sm:$0xff]
  %v30 = vld [vmem:[%s2 + $0x58] sm:$0xff]
  %v31 = vld [vmem:[%s2 + $0x60] sm:$0xff]
  %v32 = vld [vmem:[%s2 + $0x68] sm:$0xff]
  %v33 = vld [vmem:[%s2 + $0x70] sm:$0xff]
  %v34 = vld [vmem:[%s2 + $0x78] sm:$0xff]
  %v35 = vld [vmem:[%s3] sm:$0x3]
  %v37 = vlaneseq
  %v38 = vshrl.u32 %v37, 7
  %v39 = vsub.s32 0, %v38
  %v40 = vrot.slane %v35, %v39
  %v41 = vlaneseq
  %v42 = vshrl.u32 %v41, 7
  %v43 = vsub.s32 1, %v42
  %v44 = vrot.slane %v35, %v43
  %vm47 = vcmask 523264
  %v49 = vsel %vm47, %v17, 0
  %v52 = vsel %vm47, %v18, 0
  %54 = vmatprep.subr.mxu0 0.0
  %55 = vmatpush1.msra.mxu0 0.0
  %56 = vmatprep.subr.mxu0 0.0
  %57 = vmatpush1.msra.mxu0 0.0
  %58 = vmatprep.subr.mxu0 0.0
  %59 = vmatpush1.msra.mxu0 0.0
  %60 = vmatprep.subr.mxu0 0.0
  %61 = vmatpush1.msra.mxu0 0.0
  %62 = vmatprep.subr.mxu0 0.0
  %63 = vmatpush1.msra.mxu0 0.0
  %64 = vmatprep.subr.mxu0 0.0
  %65 = vmatpush1.msra.mxu0 0.0
  %66 = vmatprep.subr.mxu0 0.0
  %67 = vmatpush1.msra.mxu0 0.0
  %68 = vmatprep.subr.mxu0 0.0
  %69 = vmatpush1.msra.mxu0 0.0
  %70 = vmatprep.subr.mxu0 %v34
  %71 = vmatpush1.msra.mxu0 %v33
  %72 = vmatprep.subr.mxu0 %v32
  %73 = vmatpush1.msra.mxu0 %v31
  %74 = vmatprep.subr.mxu0 %v30
  %75 = vmatpush1.msra.mxu0 %v29
  %76 = vmatprep.subr.mxu0 %v28
  %77 = vmatpush1.msra.mxu0 %v27
  %78 = vmatprep.subr.mxu0 %v26
  %79 = vmatpush1.msra.mxu0 %v25
  %80 = vmatprep.subr.mxu0 %v24
  %81 = vmatpush1.msra.mxu0 %v23
  %82 = vmatprep.subr.mxu0 %v22
  %83 = vmatpush1.msra.mxu0 %v21
  %84 = vmatprep.subr.mxu0 %v20
  %85 = vmatpush1.msra.mxu0 %v19
  %86 = vmatprep.subr.mxu0 0.0
  %87 = vmatpush2.msra.mxu0 0.0
  %88 = vmatprep.subr.mxu0 0.0
  %89 = vmatpush2.msra.mxu0 0.0
  %90 = vmatprep.subr.mxu0 0.0
  %91 = vmatpush2.msra.mxu0 0.0
  %92 = vmatprep.subr.mxu0 0.0
  %93 = vmatpush2.msra.mxu0 0.0
  %94 = vmatprep.subr.mxu0 0.0
  %95 = vmatpush2.msra.mxu0 0.0
  %96 = vmatprep.subr.mxu0 0.0
  %97 = vmatpush2.msra.mxu0 0.0
  %98 = vmatprep.subr.mxu0 0.0
  %99 = vmatpush2.msra.mxu0 0.0
  %100 = vmatprep.subr.mxu0 0.0
  %101 = vmatpush2.msra.mxu0 0.0
  %102 = vmatprep.subr.mxu0 0.0
  %103 = vmatpush2.msra.mxu0 0.0
  %104 = vmatprep.subr.mxu0 0.0
  %105 = vmatpush2.msra.mxu0 0.0
  %106 = vmatprep.subr.mxu0 0.0
  %107 = vmatpush2.msra.mxu0 0.0
  %108 = vmatprep.subr.mxu0 0.0
  %109 = vmatpush2.msra.mxu0 0.0
  %110 = vmatprep.subr.mxu0 0.0
  %111 = vmatpush2.msra.mxu0 0.0
  %112 = vmatprep.subr.mxu0 0.0
  %113 = vmatpush2.msra.mxu0 0.0
  %114 = vmatprep.subr.mxu0 0.0
  %115 = vmatpush2.msra.mxu0 0.0
  %116 = vmatprep.subr.mxu0 0.0
  %117 = vmatpush2.msra.mxu0 0.0
  %118 = vmatprep.mubr.f32.mxu0 0.0
  %119 = vmatmul.mubr.f32.gmra.mxu0 %v49
  %v120 = vpop.f32.mrf.mxu0
  %v121 = vadd.f32 %v40, %v120
  %v122 = vpop.f32.mrf.mxu0
  %v123 = vadd.f32 %v44, %v122
  %124 = vmatprep.mubr.f32.mxu0 0.0
  %125 = vmatmul.mubr.f32.gmra.mxu0 %v52
  %v126 = vpop.f32.mrf.mxu0
  %v127 = vadd.f32 %v40, %v126
  %v128 = vpop.f32.mrf.mxu0
  %v129 = vadd.f32 %v44, %v128
  %130 = vdwg.mxu0
  %v131 = vld [vmem:[%s0] sm:$0xff]
  %v132 = vld [vmem:[%s0 + $0x8] sm:$0x7]
  %v133 = vmul.f32 %v131, %v121
  %v134 = vmul.f32 %v132, %v127
  %v135 = vadd.f32 %v133, %v123
  %v136 = vadd.f32 %v134, %v129
  %137 = vst [vmem:[%s4] sm:$0xff] %v135
  %138 = vst [vmem:[%s4 + $0x8] sm:$0x7] %v136
  // Predicated region
  $region18: #{vbr_condition_packed.1} parent=0 // pred_check
    _
  $region19: #{vbr_condition_packed.1} parent=0 // pred_check_branch
    %140 = sbr.rel (0) target = $region21
  $region20: #{vbr_condition_packed.1} parent=0 // pred_region
    _
  $region21: #{vbr_condition_packed.1} parent=0 // pred_fallthru
    _
  // Predicated region
  $region22: #{vbr_condition_packed.1} parent=0 // pred_check
    _
  $region23: #{vbr_condition_packed.1} parent=0 // pred_check_branch
    %142 = sbr.rel (0) target = $region25
  $region24: #{vbr_condition_packed.1} parent=0 // pred_region
    _
  $region25: #{vbr_condition_packed.1} parent=0 // pred_fallthru
    _

</llo_original>
